<compile_context>
chip_gen: v7x
topology: tpu7x:2x2x1
jax: 0.10.0
libtpu: 0.0.40
codegen_flags: <defaults>
</compile_context>

<pallas_src>
import jax
import jax.numpy as jnp
from jax.experimental import pallas as pl
from jax.experimental.pallas import tpu as pltpu

LANES = 128
BLOCK_ROWS = 1024   # 1024 x 128 f32 = 512 KiB per tile (x2 buffers = 1 MiB VMEM)
ACC_ROWS = 8        # vector accumulator shape (8, 128) = one f32 vreg
N_SPLITS = 2        # leading parallel axis -> shards across v7x's 2 TensorCores


# ----------------------------- Pallas kernel --------------------------------
def _l2_kernel(x_ref, o_ref, acc_ref):
    # x_ref  : (BLOCK_ROWS, 128) tile of the packed parameter slab (native dtype)
    # o_ref  : (1, ACC_ROWS, LANES) f32 per-split partial (resident across axis 1)
    # acc_ref: (ACC_ROWS, LANES) f32 VMEM vector accumulator
    i = pl.program_id(1)

    @pl.when(i == 0)
    def _():
        acc_ref[...] = jnp.zeros_like(acc_ref)

    x = x_ref[...].astype(jnp.float32)
    # (BLOCK_ROWS,128) -> (BLOCK_ROWS//8, 8, 128); sum over leading axis is a
    # chain of vreg-wise VPU adds -- no cross-lane XLU work per step.
    acc_ref[...] += jnp.sum((x * x).reshape(-1, ACC_ROWS, LANES), axis=0)

    @pl.when(i == pl.num_programs(1) - 1)
    def _():
        o_ref[0] = acc_ref[...]


def _l2_partial_sums(packed_2d: jax.Array) -> jax.Array:
    """Returns (N_SPLITS, ACC_ROWS, LANES) f32 partial sums of squares."""
    n_rows = packed_2d.shape[0]
    assert packed_2d.shape[1] == LANES
    assert n_rows % (N_SPLITS * BLOCK_ROWS) == 0
    steps = n_rows // (N_SPLITS * BLOCK_ROWS)

    return pl.pallas_call(
        _l2_kernel,
        out_shape=jax.ShapeDtypeStruct((N_SPLITS, ACC_ROWS, LANES), jnp.float32),
        grid_spec=pltpu.PrefetchScalarGridSpec(
            num_scalar_prefetch=0,
            grid=(N_SPLITS, steps),
            in_specs=[
                pl.BlockSpec((BLOCK_ROWS, LANES),
                             lambda c, i: (c * steps + i, 0)),
            ],
            out_specs=pl.BlockSpec((1, ACC_ROWS, LANES),
                                   lambda c, i: (c, 0, 0)),
            scratch_shapes=[pltpu.VMEM((ACC_ROWS, LANES), jnp.float32)],
        ),
        compiler_params=pltpu.CompilerParams(
            dimension_semantics=("parallel", "arbitrary"),
        ),
    )(packed_2d)


# ------------------------- PyTorch-semantics glue ---------------------------
def should_decay_parameter(name: str, ndim: int) -> bool:
    # Mirrors the reference: skip batchnorm / bn / bias params and 1-D params.
    # (requires_grad is True for all synthetic params here.)
    lname = name.lower()
    if "batchnorm" in lname or "bn" in lname or "bias" in lname:
        return False
    if ndim == 1:
        return False
    return True


def get_keys_to_decay(named_params) -> list:
    return [name for name, p in named_params.items()
            if should_decay_parameter(name, p.ndim)]


def l2_loss(named_params, keys, alpha: float) -> jax.Array:
    """Pack decayable params into a lane-dense slab and reduce on TPU."""
    flats = [jnp.ravel(p) for key, p in named_params.items() if key in keys]
    if not flats:
        return jnp.float32(0.0)
    # Keep the slab in the params' native dtype (bf16 stays bf16); the kernel
    # casts to f32 internally.  Mixed dtypes promote via result_type.
    dtype = jnp.result_type(*flats)
    flat = jnp.concatenate([f.astype(dtype) for f in flats])
    chunk = N_SPLITS * BLOCK_ROWS * LANES
    pad = (-flat.shape[0]) % chunk
    flat = jnp.pad(flat, (0, pad))  # zero padding contributes 0 to sum(x^2)
    packed = flat.reshape(-1, LANES)
    # TODO(synk): for very large models the host-side concat/pad writes an extra
    # copy of the params to HBM (~3x traffic); a per-tensor reduction path would
    # avoid it at the cost of one pallas_call per tensor.
    partials = _l2_partial_sums(packed)
    return jnp.sum(partials) * (0.5 * alpha)


# Pure-JAX reference for verification.
def l2_loss_ref(named_params, keys, alpha: float) -> jax.Array:
    total = jnp.float32(0.0)
    for key, p in named_params.items():
        if key in keys:
            total = total + jnp.sum(jnp.square(p.astype(jnp.float32))) * 0.5
    return total * alpha


# --------------------------------- main --------------------------------------
if __name__ == "__main__":
    key = jax.random.PRNGKey(0)
    k1, k2, k3, k4, k5, k6 = jax.random.split(key, 6)

    # Deterministic synthetic "model" parameters (shapes match a tiny conv net).
    named_params = {
        "conv1.weight": jax.random.normal(k1, (4, 3, 3, 3), jnp.float32),   # decayed
        "conv1.bias":   jax.random.normal(k2, (4,), jnp.float32),           # skipped (bias)
        "bn1.weight":   jax.random.normal(k3, (4,), jnp.float32),           # skipped (bn)
        "bn1.bias":     jax.random.normal(k4, (4,), jnp.float32),           # skipped (bn/bias)
        "fc.weight":    jax.random.normal(k5, (8, 16), jnp.float32),        # decayed
        "fc.bias":      jax.random.normal(k6, (8,), jnp.float32),           # skipped (bias)
    }
    alpha = 1e-3

    keys_to_decay = get_keys_to_decay(named_params)

    out = l2_loss(named_params, keys_to_decay, alpha)
    out = jax.block_until_ready(out)

    ref = jax.block_until_ready(l2_loss_ref(named_params, keys_to_decay, alpha))
    assert jnp.allclose(out, ref, rtol=1e-5, atol=1e-6), (out, ref)

    print("KERNEL_OK")
</pallas_src>

<mosaic_0001>
module attributes {stable_mosaic.version = 11 : i64} {
  func.func @_l2_kernel(%arg0: i32, %arg1: i32, %arg2: memref<1024x128xf32, #tpu.memory_space<vmem>>, %arg3: memref<1x8x128xf32, #tpu.memory_space<vmem>>, %arg4: memref<8x128xf32, #tpu.memory_space<vmem>>) attributes {dimension_semantics = [#tpu.dimension_semantics<parallel>, #tpu.dimension_semantics<arbitrary>], iteration_bounds = array<i64: 2, 1>, scalar_prefetch = 0 : i64, scratch_operands = 1 : i64, tpu.core_type = #tpu.core_type<tc>, window_params = [{transform_indices = @transform_0, window_bounds = array<i64: 1024, 128>}, {transform_indices = @transform_1, window_bounds = array<i64: 1, 8, 128>}]} {
    %c0_i32 = arith.constant 0 : i32
    %0 = arith.cmpi eq, %arg1, %c0_i32 : i32
    %1 = arith.extui %0 : i1 to i32
    %c0_i32_0 = arith.constant 0 : i32
    %2 = arith.cmpi ne, %1, %c0_i32_0 : i32
    scf.if %2 {
      %cst_8 = arith.constant 0.000000e+00 : f32
      %13 = vector.broadcast %cst_8 : f32 to vector<8x128xf32>
      %c0_9 = arith.constant 0 : index
      %c0_10 = arith.constant 0 : index
      %14 = vector.load %arg4[%c0_9, %c0_10] : memref<8x128xf32, #tpu.memory_space<vmem>>, vector<8x128xf32>
      tpu.vector_store %arg4[%c0_9, %c0_10], %13 {strides = array<i32>} : memref<8x128xf32, #tpu.memory_space<vmem>>, vector<8x128xf32>,
    } else {
    }
    %c0 = arith.constant 0 : index
    %c0_1 = arith.constant 0 : index
    %3 = vector.load %arg2[%c0, %c0_1] : memref<1024x128xf32, #tpu.memory_space<vmem>>, vector<1024x128xf32>
    %c0_2 = arith.constant 0 : index
    %c0_3 = arith.constant 0 : index
    %4 = vector.load %arg4[%c0_2, %c0_3] : memref<8x128xf32, #tpu.memory_space<vmem>>, vector<8x128xf32>
    %5 = arith.mulf %3, %3 : vector<1024x128xf32>
    %6 = vector.shape_cast %5 : vector<1024x128xf32> to vector<128x8x128xf32>
    %cst = arith.constant dense<0.000000e+00> : vector<8x128xf32>
    %7 = vector.multi_reduction <add>, %6, %cst [0] : vector<128x8x128xf32> to vector<8x128xf32>
    %8 = arith.addf %4, %7 : vector<8x128xf32>
    %c0_4 = arith.constant 0 : index
    %c0_5 = arith.constant 0 : index
    %9 = vector.load %arg4[%c0_4, %c0_5] : memref<8x128xf32, #tpu.memory_space<vmem>>, vector<8x128xf32>
    tpu.vector_store %arg4[%c0_4, %c0_5], %8 {strides = array<i32>} : memref<8x128xf32, #tpu.memory_space<vmem>>, vector<8x128xf32>,
    %c0_i32_6 = arith.constant 0 : i32
    %10 = arith.cmpi eq, %arg1, %c0_i32_6 : i32
    %11 = arith.extui %10 : i1 to i32
    %c0_i32_7 = arith.constant 0 : i32
    %12 = arith.cmpi ne, %11, %c0_i32_7 : i32
    scf.if %12 {
      %c0_8 = arith.constant 0 : index
      %c0_9 = arith.constant 0 : index
      %13 = vector.load %arg4[%c0_8, %c0_9] : memref<8x128xf32, #tpu.memory_space<vmem>>, vector<8x128xf32>
      %c0_10 = arith.constant 0 : index
      %c0_11 = arith.constant 0 : index
      %c0_12 = arith.constant 0 : index
      %14 = vector.load %arg3[%c0_10, %c0_11, %c0_12] : memref<1x8x128xf32, #tpu.memory_space<vmem>>, vector<1x8x128xf32>
      %15 = vector.shape_cast %14 : vector<1x8x128xf32> to vector<8x128xf32>
      %16 = vector.shape_cast %13 : vector<8x128xf32> to vector<1x8x128xf32>
      tpu.vector_store %arg3[%c0_10, %c0_11, %c0_12], %16 {strides = array<i32>} : memref<1x8x128xf32, #tpu.memory_space<vmem>>, vector<1x8x128xf32>,
    } else {
    }
    return
  }
  func.func @transform_0(%arg0: i32, %arg1: i32) -> (i32, i32) {
    %c1_i32 = arith.constant 1 : i32
    %0 = arith.muli %arg0, %c1_i32 : i32
    %1 = arith.addi %0, %arg1 : i32
    %c0_i32 = arith.constant 0 : i32
    %c0_i32_0 = arith.constant 0 : i32
    return %1, %c0_i32 : i32, i32
  }
  func.func @transform_1(%arg0: i32, %arg1: i32) -> (i32, i32, i32) {
    %c0_i32 = arith.constant 0 : i32
    %c0_i32_0 = arith.constant 0 : i32
    %c0_i32_1 = arith.constant 0 : i32
    return %arg0, %c0_i32, %c0_i32_0 : i32, i32, i32
  }
}

</mosaic_0001>

<llo_original>
// kernel: tpu_custom_call.1
$region0: #{tpu_custom_call.1}
  #allocation0 [shape = 'u32[]', space=smem, size = 0x4, offset = 0x4, fixed_abs, tag = 'smem constant byte address 0x4 - core index']
  #allocation1 [shape = 'u32[144,128]{1,0:T(1,128)}', space=vmem, size = 0x12000, scoped, tag = 'internal scratch']
  #allocation2 [shape = 'f32[8,128]{1,0:T(8,128)}', space=vmem, size = 0x1000, scoped, tag = 'scratch operand']
  %s0 = inlined_call_operand.hbm [shape: f32[2048,128], index: 0, kind: input, shape index: {}]
  %s1 = inlined_call_operand.hbm [shape: f32[2,8,128], index: 1, kind: output, shape index: {}]
  %s2 = sld [smem:[#allocation0]]
  $region49: #{tpu_custom_call.1} parent=0
    _
  %s4 = ssub.s32 1, %s2
  %s5 = scalar_select 0, %s4, %s2
  $region1: #{tpu_custom_call.1} parent=0
    #allocation3 [shape = 'u8[1048576]{0}', space=vmem, size = 0x100000, scoped, tag = 'input window, operand 0']
    #allocation4 [shape = 's32[2]{0}', space=sflag, size = 0x8, scoped, tag = 'scoped memory for tpu_custom_call.1']
    #allocation5 [shape = 's32[2]{0}', space=sflag, size = 0x8, scoped, tag = 'scoped memory for tpu_custom_call.1']
    #allocation6 [shape = 'u8[8192]{0}', space=vmem, size = 0x2000, scoped, tag = 'output window, operand 0']
    %6 = vsyncpa [#allocation4], 0
    %s7 = scalar_lea.sflag [#allocation4], 1
    %8 = vsyncpa %s7, 0
    %9 = vsyncpa [#allocation5], 0
    %s10 = scalar_lea.sflag [#allocation5], 1
    %11 = vsyncpa %s10, 0
    loop: start=0, step=1, limit=4
    $region2: #{tpu_custom_call.1} parent=1 // loop_pre_header
      _
    $region3: #{tpu_custom_call.1} parent=1 // loop_header
      %s13 = sphi 0, %s17
      %p14 = scmp.ge.s32.totalorder %s13, 4
      %s20 = sphi 0, %s32
      %s21 = sphi 0, %s28
      %s22 = sphi 0, %s20
      %s23 = sphi 0, %s21
      %s24 = sphi 0, %s22
      %s25 = sphi 0, %s23
      %s37 = sphi 0, %s39
      %s40 = sphi 0, %s37
      %s41 = sphi 0, %s40
      %s57 = sphi 0, %s41
      %s63 = sphi 0, %s65
      %s66 = sphi 0, %s63
      %s67 = sphi 0, %s66
      %s83 = sphi 0, %s67
    $region4: #{tpu_custom_call.1} parent=1 // loop_header_branch
      %16 = sbr.rel (%p14) target = $region8
    $region5: #{tpu_custom_call.1} parent=1 // loop_body
      %s18 = ssub.s32 %s13, 1
      %s19 = ssub.s32 %s13, 2
      %s26 = sadd.s32 1, %s21
      %p27 = scmp.ge.s32.totalorder %s26, 1
      %s28 = scalar_select %p27, 0, %s26
      %s29 = sadd.s32 1, %s20
      %s30 = scalar_select %p27, %s29, %s20
      %p31 = scmp.ge.s32.totalorder %s30, 2
      %s32 = scalar_select %p31, 0, %s30
      %s33 = sadd.s32 %s20, %s21
      %s34 = sadd.s32 %s32, %s28
      %s35 = ssub.s32 %s33, %s34
      %p36 = scmp.eq.s32.totalorder %s35, 0
      %s38 = sadd.s32 %s37, 1
      %s39 = scalar_select %p36, %s37, %s38
      %p42 = pneg %p36
      %p43 = scmp.eq.s32.totalorder %s13, 1
      %p44 = por %p42, %p43
      %p45 = scmp.ne.s32.totalorder %s37, %s40
      %p46 = scmp.eq.s32.totalorder %s13, 0
      %p47 = por %p45, %p46
      %p48 = scmp.ne.s32.totalorder %s37, %s40
      %p49 = scmp.eq.s32.totalorder %s18, 1
      %p50 = por %p48, %p49
      %p51 = scmp.ne.s32.totalorder %s40, %s41
      %p52 = scmp.eq.s32.totalorder %s18, 0
      %p53 = por %p51, %p52
      %p54 = scmp.ne.s32.totalorder %s40, %s41
      %p55 = scmp.eq.s32.totalorder %s19, 1
      %p56 = por %p54, %p55
      %p58 = scmp.ne.s32.totalorder %s41, %s57
      %p59 = scmp.eq.s32.totalorder %s19, 0
      %p60 = por %p58, %p59
      %s61 = ssub.s32 %s20, %s32
      %p62 = scmp.eq.s32.totalorder %s61, 0
      %s64 = sadd.s32 %s63, 1
      %s65 = scalar_select %p62, %s63, %s64
      %p68 = pneg %p62
      %p69 = scmp.eq.s32.totalorder %s13, 1
      %p70 = por %p68, %p69
      %p71 = scmp.ne.s32.totalorder %s63, %s66
      %p72 = scmp.eq.s32.totalorder %s13, 0
      %p73 = por %p71, %p72
      %p74 = scmp.ne.s32.totalorder %s63, %s66
      %p75 = scmp.eq.s32.totalorder %s18, 1
      %p76 = por %p74, %p75
      %p77 = scmp.ne.s32.totalorder %s66, %s67
      %p78 = scmp.eq.s32.totalorder %s18, 0
      %p79 = por %p77, %p78
      %p80 = scmp.ne.s32.totalorder %s66, %s67
      %p81 = scmp.eq.s32.totalorder %s19, 1
      %p82 = por %p80, %p81
      %p84 = scmp.ne.s32.totalorder %s67, %s83
      %p85 = scmp.eq.s32.totalorder %s19, 0
      %p86 = por %p84, %p85
      %p87 = scmp.le.s32.totalorder 1, %s13
      %p88 = scmp.lt.s32.totalorder %s13, 3
      %p89 = pnand %p87, %p88
      %p90 = pneg %p89
      // Predicated region
      $region9: #{tpu_custom_call.1} parent=5 // pred_check
        _
      $region10: #{tpu_custom_call.1} parent=5 // pred_check_branch
        %92 = sbr.rel (%p89) target = $region12
      $region11: #{tpu_custom_call.1} parent=5 // pred_region
        %s93 = ssub.s32 %s13, 1
      $region12: #{tpu_custom_call.1} parent=5 // pred_fallthru
        _
      %p94 = scmp.lt.s32.totalorder %s13, 2
      // Predicated region
      $region13: #{tpu_custom_call.1} parent=5 // pred_check
        %p95 = pneg %p94
      $region14: #{tpu_custom_call.1} parent=5 // pred_check_branch
        %97 = sbr.rel (%p95) target = $region16
      $region15: #{tpu_custom_call.1} parent=5 // pred_region
        // Predicated region
        $region17: #{tpu_custom_call.1} parent=15 // pred_check
          %p98 = pneg %p47
        $region18: #{tpu_custom_call.1} parent=15 // pred_check_branch
          %100 = sbr.rel (%p98) target = $region20
        $region19: #{tpu_custom_call.1} parent=15 // pred_region
          %s101 = sand.u32 %s37, 1
          %s102 = scalar_lea.sflag [#allocation4], %s101
          %s103 = sand.u32 %s37, 1
          %s104 = smul.addr %s103, 1024
          %s105 = scalar_lea.vmem [#allocation3], %s104
          %s106 = sadd.s32 %s20, %s21
          %s107 = smul.u32 128, %s106
          %s109 = ssub.s32 16384, 16384
          %110 = vsyncadd %s102, %s109
          %s111 = smul.addr %s107, 128
          %s112 = scalar_lea.hbm %s0, %s111
          %s113 = sshll.u32 %s105, 4
          %s114 = int_to_ptr.vmem [resolvable:$true] %s113
          %119 = dma.hbm_to_vmem [thread:$0]  %s112, 16384, %s114, %s102, 128, 128, 8
        $region20: #{tpu_custom_call.1} parent=15 // pred_fallthru
          _
      $region16: #{tpu_custom_call.1} parent=5 // pred_fallthru
        _
      %p120 = scmp.le.s32.totalorder 1, %s13
      %p121 = scmp.lt.s32.totalorder %s13, 3
      %p122 = pnand %p120, %p121
      %p123 = pneg %p122
      // Predicated region
      $region21: #{tpu_custom_call.1} parent=5 // pred_check
        _
      $region22: #{tpu_custom_call.1} parent=5 // pred_check_branch
        %125 = sbr.rel (%p122) target = $region24
      $region23: #{tpu_custom_call.1} parent=5 // pred_region
        %s126 = ssub.s32 %s13, 1
        %s127 = sand.u32 %s40, 1
        %s128 = scalar_lea.sflag [#allocation4], %s127
        %s129 = sand.u32 %s40, 1
        %s130 = smul.addr %s129, 1024
        %s131 = scalar_lea.vmem [#allocation3], %s130
        // Predicated region
        $region25: #{tpu_custom_call.1} parent=23 // pred_check
          %p132 = pneg %p53
        $region26: #{tpu_custom_call.1} parent=23 // pred_check_branch
          %134 = sbr.rel (%p132) target = $region28
        $region27: #{tpu_custom_call.1} parent=23 // pred_region
          %135 = dma.done %s128, 16384
        $region28: #{tpu_custom_call.1} parent=23 // pred_fallthru
          _
        %s136 = sand.u32 %s40, 1
        %s137 = scalar_lea.sflag [#allocation4], %s136
        %s138 = sand.u32 %s40, 1
        %s139 = smul.addr %s138, 1024
        %s140 = scalar_lea.vmem [#allocation3], %s139
        %p141 = pneg %p53
        %p142 = pneg %p50
        %p143 = pneg %p79
        %p144 = pneg %p76
        %s145 = sand.u32 %s66, 1
        %s146 = scalar_lea.sflag [#allocation5], %s145
        %s147 = sand.u32 %s66, 1
        %s148 = smul.addr %s147, 8
        %s149 = scalar_lea.vmem [#allocation6], %s148
        %s150 = sadd.s32 %s22, %s23
        %s151 = smul.u32 128, %s150
        %p152 = scmp.eq.s32.totalorder %s23, 0
        // Predicated region
        $region29: #{tpu_custom_call.1} parent=23 // pred_check
          %p153 = pneg %p152
        $region30: #{tpu_custom_call.1} parent=23 // pred_check_branch
          %155 = sbr.rel (%p153) target = $region32
        $region31: #{tpu_custom_call.1} parent=23 // pred_region
          %156 = vst [vmem:[#allocation2] sm:$0xff] 0.0
        $region32: #{tpu_custom_call.1} parent=23 // pred_fallthru
          _
        %v157 = vld [vmem:[%s131] sm:$0xff]
        %v158 = vld [vmem:[%s131 + $0x8] sm:$0xff]
        %v159 = vld [vmem:[%s131 + $0x10] sm:$0xff]
        %v160 = vld [vmem:[%s131 + $0x18] sm:$0xff]
        %v161 = vld [vmem:[%s131 + $0x20] sm:$0xff]
        %v162 = vld [vmem:[%s131 + $0x28] sm:$0xff]
        %v163 = vld [vmem:[%s131 + $0x30] sm:$0xff]
        %v164 = vld [vmem:[%s131 + $0x38] sm:$0xff]
        %v165 = vld [vmem:[%s131 + $0x40] sm:$0xff]
        %v166 = vld [vmem:[%s131 + $0x48] sm:$0xff]
        %v167 = vld [vmem:[%s131 + $0x50] sm:$0xff]
        %v168 = vld [vmem:[%s131 + $0x58] sm:$0xff]
        %v169 = vld [vmem:[%s131 + $0x60] sm:$0xff]
        %v170 = vld [vmem:[%s131 + $0x68] sm:$0xff]
        %v171 = vld [vmem:[%s131 + $0x70] sm:$0xff]
        %v172 = vld [vmem:[%s131 + $0x78] sm:$0xff]
        %v173 = vld [vmem:[%s131 + $0x80] sm:$0xff]
        %v174 = vld [vmem:[%s131 + $0x88] sm:$0xff]
        %v175 = vld [vmem:[%s131 + $0x90] sm:$0xff]
        %v176 = vld [vmem:[%s131 + $0x98] sm:$0xff]
        %v177 = vld [vmem:[%s131 + $0xa0] sm:$0xff]
        %v178 = vld [vmem:[%s131 + $0xa8] sm:$0xff]
        %v179 = vld [vmem:[%s131 + $0xb0] sm:$0xff]
        %v180 = vld [vmem:[%s131 + $0xb8] sm:$0xff]
        %v181 = vld [vmem:[%s131 + $0xc0] sm:$0xff]
        %v182 = vld [vmem:[%s131 + $0xc8] sm:$0xff]
        %v183 = vld [vmem:[%s131 + $0xd0] sm:$0xff]
        %v184 = vld [vmem:[%s131 + $0xd8] sm:$0xff]
        %v185 = vld [vmem:[%s131 + $0xe0] sm:$0xff]
        %v186 = vld [vmem:[%s131 + $0xe8] sm:$0xff]
        %v187 = vld [vmem:[%s131 + $0xf0] sm:$0xff]
        %v188 = vld [vmem:[%s131 + $0xf8] sm:$0xff]
        %v189 = vld [vmem:[%s131 + $0x100] sm:$0xff]
        %v190 = vld [vmem:[%s131 + $0x108] sm:$0xff]
        %v191 = vld [vmem:[%s131 + $0x110] sm:$0xff]
        %v192 = vld [vmem:[%s131 + $0x118] sm:$0xff]
        %v193 = vld [vmem:[%s131 + $0x120] sm:$0xff]
        %v194 = vld [vmem:[%s131 + $0x128] sm:$0xff]
        %v195 = vld [vmem:[%s131 + $0x130] sm:$0xff]
        %v196 = vld [vmem:[%s131 + $0x138] sm:$0xff]
        %v197 = vld [vmem:[%s131 + $0x140] sm:$0xff]
        %v198 = vld [vmem:[%s131 + $0x148] sm:$0xff]
        %v199 = vld [vmem:[%s131 + $0x150] sm:$0xff]
        %v200 = vld [vmem:[%s131 + $0x158] sm:$0xff]
        %v201 = vld [vmem:[%s131 + $0x160] sm:$0xff]
        %v202 = vld [vmem:[%s131 + $0x168] sm:$0xff]
        %v203 = vld [vmem:[%s131 + $0x170] sm:$0xff]
        %v204 = vld [vmem:[%s131 + $0x178] sm:$0xff]
        %v205 = vld [vmem:[%s131 + $0x180] sm:$0xff]
        %v206 = vld [vmem:[%s131 + $0x188] sm:$0xff]
        %v207 = vld [vmem:[%s131 + $0x190] sm:$0xff]
        %v208 = vld [vmem:[%s131 + $0x198] sm:$0xff]
        %v209 = vld [vmem:[%s131 + $0x1a0] sm:$0xff]
        %v210 = vld [vmem:[%s131 + $0x1a8] sm:$0xff]
        %v211 = vld [vmem:[%s131 + $0x1b0] sm:$0xff]
        %v212 = vld [vmem:[%s131 + $0x1b8] sm:$0xff]
        %v213 = vld [vmem:[%s131 + $0x1c0] sm:$0xff]
        %v214 = vld [vmem:[%s131 + $0x1c8] sm:$0xff]
        %v215 = vld [vmem:[%s131 + $0x1d0] sm:$0xff]
        %v216 = vld [vmem:[%s131 + $0x1d8] sm:$0xff]
        %v217 = vld [vmem:[%s131 + $0x1e0] sm:$0xff]
        %v218 = vld [vmem:[%s131 + $0x1e8] sm:$0xff]
        %v219 = vld [vmem:[%s131 + $0x1f0] sm:$0xff]
        %v220 = vld [vmem:[%s131 + $0x1f8] sm:$0xff]
        %v221 = vld [vmem:[%s131 + $0x200] sm:$0xff]
        %v222 = vld [vmem:[%s131 + $0x208] sm:$0xff]
        %v223 = vld [vmem:[%s131 + $0x210] sm:$0xff]
        %v224 = vld [vmem:[%s131 + $0x218] sm:$0xff]
        %v225 = vld [vmem:[%s131 + $0x220] sm:$0xff]
        %v226 = vld [vmem:[%s131 + $0x228] sm:$0xff]
        %v227 = vld [vmem:[%s131 + $0x230] sm:$0xff]
        %v228 = vld [vmem:[%s131 + $0x238] sm:$0xff]
        %v229 = vld [vmem:[%s131 + $0x240] sm:$0xff]
        %v230 = vld [vmem:[%s131 + $0x248] sm:$0xff]
        %v231 = vld [vmem:[%s131 + $0x250] sm:$0xff]
        %v232 = vld [vmem:[%s131 + $0x258] sm:$0xff]
        %v233 = vld [vmem:[%s131 + $0x260] sm:$0xff]
        %v234 = vld [vmem:[%s131 + $0x268] sm:$0xff]
        %v235 = vld [vmem:[%s131 + $0x270] sm:$0xff]
        %v236 = vld [vmem:[%s131 + $0x278] sm:$0xff]
        %v237 = vld [vmem:[%s131 + $0x280] sm:$0xff]
        %v238 = vld [vmem:[%s131 + $0x288] sm:$0xff]
        %v239 = vld [vmem:[%s131 + $0x290] sm:$0xff]
        %v240 = vld [vmem:[%s131 + $0x298] sm:$0xff]
        %v241 = vld [vmem:[%s131 + $0x2a0] sm:$0xff]
        %v242 = vld [vmem:[%s131 + $0x2a8] sm:$0xff]
        %v243 = vld [vmem:[%s131 + $0x2b0] sm:$0xff]
        %v244 = vld [vmem:[%s131 + $0x2b8] sm:$0xff]
        %v245 = vld [vmem:[%s131 + $0x2c0] sm:$0xff]
        %v246 = vld [vmem:[%s131 + $0x2c8] sm:$0xff]
        %v247 = vld [vmem:[%s131 + $0x2d0] sm:$0xff]
        %v248 = vld [vmem:[%s131 + $0x2d8] sm:$0xff]
        %v249 = vld [vmem:[%s131 + $0x2e0] sm:$0xff]
        %v250 = vld [vmem:[%s131 + $0x2e8] sm:$0xff]
        %v251 = vld [vmem:[%s131 + $0x2f0] sm:$0xff]
        %v252 = vld [vmem:[%s131 + $0x2f8] sm:$0xff]
        %v253 = vld [vmem:[%s131 + $0x300] sm:$0xff]
        %v254 = vld [vmem:[%s131 + $0x308] sm:$0xff]
        %v255 = vld [vmem:[%s131 + $0x310] sm:$0xff]
        %v256 = vld [vmem:[%s131 + $0x318] sm:$0xff]
        %v257 = vld [vmem:[%s131 + $0x320] sm:$0xff]
        %v258 = vld [vmem:[%s131 + $0x328] sm:$0xff]
        %v259 = vld [vmem:[%s131 + $0x330] sm:$0xff]
        %v260 = vld [vmem:[%s131 + $0x338] sm:$0xff]
        %v261 = vld [vmem:[%s131 + $0x340] sm:$0xff]
        %v262 = vld [vmem:[%s131 + $0x348] sm:$0xff]
        %v263 = vld [vmem:[%s131 + $0x350] sm:$0xff]
        %v264 = vld [vmem:[%s131 + $0x358] sm:$0xff]
        %v265 = vld [vmem:[%s131 + $0x360] sm:$0xff]
        %v266 = vld [vmem:[%s131 + $0x368] sm:$0xff]
        %v267 = vld [vmem:[%s131 + $0x370] sm:$0xff]
        %v268 = vld [vmem:[%s131 + $0x378] sm:$0xff]
        %v269 = vld [vmem:[%s131 + $0x380] sm:$0xff]
        %v270 = vld [vmem:[%s131 + $0x388] sm:$0xff]
        %v271 = vld [vmem:[%s131 + $0x390] sm:$0xff]
        %v272 = vld [vmem:[%s131 + $0x398] sm:$0xff]
        %v273 = vld [vmem:[%s131 + $0x3a0] sm:$0xff]
        %v274 = vld [vmem:[%s131 + $0x3a8] sm:$0xff]
        %v275 = vld [vmem:[%s131 + $0x3b0] sm:$0xff]
        %v276 = vld [vmem:[%s131 + $0x3b8] sm:$0xff]
        %v277 = vld [vmem:[%s131 + $0x3c0] sm:$0xff]
        %v278 = vld [vmem:[%s131 + $0x3c8] sm:$0xff]
        %v279 = vld [vmem:[%s131 + $0x3d0] sm:$0xff]
        %v280 = vld [vmem:[%s131 + $0x3d8] sm:$0xff]
        %v281 = vld [vmem:[%s131 + $0x3e0] sm:$0xff]
        %v282 = vld [vmem:[%s131 + $0x3e8] sm:$0xff]
        %v283 = vld [vmem:[%s131 + $0x3f0] sm:$0xff]
        %v284 = vld [vmem:[%s131 + $0x3f8] sm:$0xff]
        %v285 = vld [vmem:[#allocation2] sm:$0xff]
        %v286 = vmul.f32 %v157, %v157
        %v287 = vmul.f32 %v158, %v158
        %v288 = vmul.f32 %v159, %v159
        %v289 = vmul.f32 %v160, %v160
        %v290 = vmul.f32 %v161, %v161
        %v291 = vmul.f32 %v162, %v162
        %v292 = vmul.f32 %v163, %v163
        %v293 = vmul.f32 %v164, %v164
        %v294 = vmul.f32 %v165, %v165
        %v295 = vmul.f32 %v166, %v166
        %v296 = vmul.f32 %v167, %v167
        %v297 = vmul.f32 %v168, %v168
        %v298 = vmul.f32 %v169, %v169
        %v299 = vmul.f32 %v170, %v170
        %v300 = vmul.f32 %v171, %v171
        %v301 = vmul.f32 %v172, %v172
        %v302 = vmul.f32 %v173, %v173
        %v303 = vmul.f32 %v174, %v174
        %v304 = vmul.f32 %v175, %v175
        %v305 = vmul.f32 %v176, %v176
        %v306 = vmul.f32 %v177, %v177
        %v307 = vmul.f32 %v178, %v178
        %v308 = vmul.f32 %v179, %v179
        %v309 = vmul.f32 %v180, %v180
        %v310 = vmul.f32 %v181, %v181
        %v311 = vmul.f32 %v182, %v182
        %v312 = vmul.f32 %v183, %v183
        %v313 = vmul.f32 %v184, %v184
        %v314 = vmul.f32 %v185, %v185
        %v315 = vmul.f32 %v186, %v186
        %v316 = vmul.f32 %v187, %v187
        %v317 = vmul.f32 %v188, %v188
        %v318 = vmul.f32 %v189, %v189
        %v319 = vmul.f32 %v190, %v190
        %v320 = vmul.f32 %v191, %v191
        %v321 = vmul.f32 %v192, %v192
        %v322 = vmul.f32 %v193, %v193
        %v323 = vmul.f32 %v194, %v194
        %v324 = vmul.f32 %v195, %v195
        %v325 = vmul.f32 %v196, %v196
        %v326 = vmul.f32 %v197, %v197
        %v327 = vmul.f32 %v198, %v198
        %v328 = vmul.f32 %v199, %v199
        %v329 = vmul.f32 %v200, %v200
        %v330 = vmul.f32 %v201, %v201
        %v331 = vmul.f32 %v202, %v202
        %v332 = vmul.f32 %v203, %v203
        %v333 = vmul.f32 %v204, %v204
        %v334 = vmul.f32 %v205, %v205
        %v335 = vmul.f32 %v206, %v206
        %v336 = vmul.f32 %v207, %v207
        %v337 = vmul.f32 %v208, %v208
        %v338 = vmul.f32 %v209, %v209
        %v339 = vmul.f32 %v210, %v210
        %v340 = vmul.f32 %v211, %v211
        %v341 = vmul.f32 %v212, %v212
        %v342 = vmul.f32 %v213, %v213
        %v343 = vmul.f32 %v214, %v214
        %v344 = vmul.f32 %v215, %v215
        %v345 = vmul.f32 %v216, %v216
        %v346 = vmul.f32 %v217, %v217
        %v347 = vmul.f32 %v218, %v218
        %v348 = vmul.f32 %v219, %v219
        %v349 = vmul.f32 %v220, %v220
        %v350 = vmul.f32 %v221, %v221
        %v351 = vmul.f32 %v222, %v222
        %v352 = vmul.f32 %v223, %v223
        %v353 = vmul.f32 %v224, %v224
        %v354 = vmul.f32 %v225, %v225
        %v355 = vmul.f32 %v226, %v226
        %v356 = vmul.f32 %v227, %v227
        %v357 = vmul.f32 %v228, %v228
        %v358 = vmul.f32 %v229, %v229
        %v359 = vmul.f32 %v230, %v230
        %v360 = vmul.f32 %v231, %v231
        %v361 = vmul.f32 %v232, %v232
        %v362 = vmul.f32 %v233, %v233
        %v363 = vmul.f32 %v234, %v234
        %v364 = vmul.f32 %v235, %v235
        %v365 = vmul.f32 %v236, %v236
        %v366 = vmul.f32 %v237, %v237
        %v367 = vmul.f32 %v238, %v238
        %v368 = vmul.f32 %v239, %v239
        %v369 = vmul.f32 %v240, %v240
        %v370 = vmul.f32 %v241, %v241
        %v371 = vmul.f32 %v242, %v242
        %v372 = vmul.f32 %v243, %v243
        %v373 = vmul.f32 %v244, %v244
        %v374 = vmul.f32 %v245, %v245
        %v375 = vmul.f32 %v246, %v246
        %v376 = vmul.f32 %v247, %v247
        %v377 = vmul.f32 %v248, %v248
        %v378 = vmul.f32 %v249, %v249
        %v379 = vmul.f32 %v250, %v250
        %v380 = vmul.f32 %v251, %v251
        %v381 = vmul.f32 %v252, %v252
        %v382 = vmul.f32 %v253, %v253
        %v383 = vmul.f32 %v254, %v254
        %v384 = vmul.f32 %v255, %v255
        %v385 = vmul.f32 %v256, %v256
        %v386 = vmul.f32 %v257, %v257
        %v387 = vmul.f32 %v258, %v258
        %v388 = vmul.f32 %v259, %v259
        %v389 = vmul.f32 %v260, %v260
        %v390 = vmul.f32 %v261, %v261
        %v391 = vmul.f32 %v262, %v262
        %v392 = vmul.f32 %v263, %v263
        %v393 = vmul.f32 %v264, %v264
        %v394 = vmul.f32 %v265, %v265
        %v395 = vmul.f32 %v266, %v266
        %v396 = vmul.f32 %v267, %v267
        %v397 = vmul.f32 %v268, %v268
        %v398 = vmul.f32 %v269, %v269
        %v399 = vmul.f32 %v270, %v270
        %v400 = vmul.f32 %v271, %v271
        %v401 = vmul.f32 %v272, %v272
        %v402 = vmul.f32 %v273, %v273
        %v403 = vmul.f32 %v274, %v274
        %v404 = vmul.f32 %v275, %v275
        %v405 = vmul.f32 %v276, %v276
        %v406 = vmul.f32 %v277, %v277
        %v407 = vmul.f32 %v278, %v278
        %v408 = vmul.f32 %v279, %v279
        %v409 = vmul.f32 %v280, %v280
        %v410 = vmul.f32 %v281, %v281
        %v411 = vmul.f32 %v282, %v282
        %v412 = vmul.f32 %v283, %v283
        %v413 = vmul.f32 %v284, %v284
        %v414 = vadd.f32 %v286, %v287
        %v415 = vadd.f32 %v414, %v288
        %v416 = vadd.f32 %v415, %v289
        %v417 = vadd.f32 %v416, %v290
        %v418 = vadd.f32 %v417, %v291
        %v419 = vadd.f32 %v418, %v292
        %v420 = vadd.f32 %v419, %v293
        %v421 = vadd.f32 %v420, %v294
        %v422 = vadd.f32 %v421, %v295
        %v423 = vadd.f32 %v422, %v296
        %v424 = vadd.f32 %v423, %v297
        %v425 = vadd.f32 %v424, %v298
        %v426 = vadd.f32 %v425, %v299
        %v427 = vadd.f32 %v426, %v300
        %v428 = vadd.f32 %v427, %v301
        %v429 = vadd.f32 %v428, %v302
        %v430 = vadd.f32 %v429, %v303
        %v431 = vadd.f32 %v430, %v304
        %v432 = vadd.f32 %v431, %v305
        %v433 = vadd.f32 %v432, %v306
        %v434 = vadd.f32 %v433, %v307
        %v435 = vadd.f32 %v434, %v308
        %v436 = vadd.f32 %v435, %v309
        %v437 = vadd.f32 %v436, %v310
        %v438 = vadd.f32 %v437, %v311
        %v439 = vadd.f32 %v438, %v312
        %v440 = vadd.f32 %v439, %v313
        %v441 = vadd.f32 %v440, %v314
        %v442 = vadd.f32 %v441, %v315
        %v443 = vadd.f32 %v442, %v316
        %v444 = vadd.f32 %v443, %v317
        %v445 = vadd.f32 %v444, %v318
        %v446 = vadd.f32 %v445, %v319
        %v447 = vadd.f32 %v446, %v320
        %v448 = vadd.f32 %v447, %v321
        %v449 = vadd.f32 %v448, %v322
        %v450 = vadd.f32 %v449, %v323
        %v451 = vadd.f32 %v450, %v324
        %v452 = vadd.f32 %v451, %v325
        %v453 = vadd.f32 %v452, %v326
        %v454 = vadd.f32 %v453, %v327
        %v455 = vadd.f32 %v454, %v328
        %v456 = vadd.f32 %v455, %v329
        %v457 = vadd.f32 %v456, %v330
        %v458 = vadd.f32 %v457, %v331
        %v459 = vadd.f32 %v458, %v332
        %v460 = vadd.f32 %v459, %v333
        %v461 = vadd.f32 %v460, %v334
        %v462 = vadd.f32 %v461, %v335
        %v463 = vadd.f32 %v462, %v336
        %v464 = vadd.f32 %v463, %v337
        %v465 = vadd.f32 %v464, %v338
        %v466 = vadd.f32 %v465, %v339
        %v467 = vadd.f32 %v466, %v340
        %v468 = vadd.f32 %v467, %v341
        %v469 = vadd.f32 %v468, %v342
        %v470 = vadd.f32 %v469, %v343
        %v471 = vadd.f32 %v470, %v344
        %v472 = vadd.f32 %v471, %v345
        %v473 = vadd.f32 %v472, %v346
        %v474 = vadd.f32 %v473, %v347
        %v475 = vadd.f32 %v474, %v348
        %v476 = vadd.f32 %v475, %v349
        %v477 = vadd.f32 %v476, %v350
        %v478 = vadd.f32 %v477, %v351
        %v479 = vadd.f32 %v478, %v352
        %v480 = vadd.f32 %v479, %v353
        %v481 = vadd.f32 %v480, %v354
        %v482 = vadd.f32 %v481, %v355
        %v483 = vadd.f32 %v482, %v356
        %v484 = vadd.f32 %v483, %v357
        %v485 = vadd.f32 %v484, %v358
        %v486 = vadd.f32 %v485, %v359
        %v487 = vadd.f32 %v486, %v360
        %v488 = vadd.f32 %v487, %v361
        %v489 = vadd.f32 %v488, %v362
        %v490 = vadd.f32 %v489, %v363
        %v491 = vadd.f32 %v490, %v364
        %v492 = vadd.f32 %v491, %v365
        %v493 = vadd.f32 %v492, %v366
        %v494 = vadd.f32 %v493, %v367
        %v495 = vadd.f32 %v494, %v368
        %v496 = vadd.f32 %v495, %v369
        %v497 = vadd.f32 %v496, %v370
        %v498 = vadd.f32 %v497, %v371
        %v499 = vadd.f32 %v498, %v372
        %v500 = vadd.f32 %v499, %v373
        %v501 = vadd.f32 %v500, %v374
        %v502 = vadd.f32 %v501, %v375
        %v503 = vadd.f32 %v502, %v376
        %v504 = vadd.f32 %v503, %v377
        %v505 = vadd.f32 %v504, %v378
        %v506 = vadd.f32 %v505, %v379
        %v507 = vadd.f32 %v506, %v380
        %v508 = vadd.f32 %v507, %v381
        %v509 = vadd.f32 %v508, %v382
        %v510 = vadd.f32 %v509, %v383
        %v511 = vadd.f32 %v510, %v384
        %v512 = vadd.f32 %v511, %v385
        %v513 = vadd.f32 %v512, %v386
        %v514 = vadd.f32 %v513, %v387
        %v515 = vadd.f32 %v514, %v388
        %v516 = vadd.f32 %v515, %v389
        %v517 = vadd.f32 %v516, %v390
        %v518 = vadd.f32 %v517, %v391
        %v519 = vadd.f32 %v518, %v392
        %v520 = vadd.f32 %v519, %v393
        %v521 = vadd.f32 %v520, %v394
        %v522 = vadd.f32 %v521, %v395
        %v523 = vadd.f32 %v522, %v396
        %v524 = vadd.f32 %v523, %v397
        %v525 = vadd.f32 %v524, %v398
        %v526 = vadd.f32 %v525, %v399
        %v527 = vadd.f32 %v526, %v400
        %v528 = vadd.f32 %v527, %v401
        %v529 = vadd.f32 %v528, %v402
        %v530 = vadd.f32 %v529, %v403
        %v531 = vadd.f32 %v530, %v404
        %v532 = vadd.f32 %v531, %v405
        %v533 = vadd.f32 %v532, %v406
        %v534 = vadd.f32 %v533, %v407
        %v535 = vadd.f32 %v534, %v408
        %v536 = vadd.f32 %v535, %v409
        %v537 = vadd.f32 %v536, %v410
        %v538 = vadd.f32 %v537, %v411
        %v539 = vadd.f32 %v538, %v412
        %v540 = vadd.f32 %v539, %v413
        %v541 = vadd.f32 %v285, %v540
        %542 = vst [vmem:[#allocation2] sm:$0xff] %v541
        // Predicated region
        $region33: #{tpu_custom_call.1} parent=23 // pred_check
          %p543 = pneg %p152
        $region34: #{tpu_custom_call.1} parent=23 // pred_check_branch
          %545 = sbr.rel (%p543) target = $region36
        $region35: #{tpu_custom_call.1} parent=23 // pred_region
          %v546 = vld [vmem:[#allocation2] sm:$0xff]
          %547 = vst [vmem:[%s149] sm:$0xff] %v546
        $region36: #{tpu_custom_call.1} parent=23 // pred_fallthru
          _
        %s548 = sand.u32 %s66, 1
        %s549 = scalar_lea.sflag [#allocation5], %s548
        %s550 = sand.u32 %s66, 1
        %s551 = smul.addr %s550, 8
        %s552 = scalar_lea.vmem [#allocation6], %s551
        // Predicated region
        $region37: #{tpu_custom_call.1} parent=23 // pred_check
          %p553 = pneg %p76
        $region38: #{tpu_custom_call.1} parent=23 // pred_check_branch
          %555 = sbr.rel (%p553) target = $region40
        $region39: #{tpu_custom_call.1} parent=23 // pred_region
          %s557 = ssub.s32 128, 128
          %558 = vsyncadd %s549, %s557
          %s559 = smul.addr %s22, 128
          %s560 = scalar_lea.hbm %s1, %s559
          %s562 = sshll.u32 %s552, 4
          %s563 = int_to_ptr.vmem [resolvable:$true] %s562
          %565 = dma.vmem_to_hbm [thread:$0]  %s563, 128, %s560, %s549
        $region40: #{tpu_custom_call.1} parent=23 // pred_fallthru
          _
      $region24: #{tpu_custom_call.1} parent=5 // pred_fallthru
        _
      %p566 = scmp.le.s32.totalorder 2, %s13
      // Predicated region
      $region41: #{tpu_custom_call.1} parent=5 // pred_check
        %p567 = pneg %p566
      $region42: #{tpu_custom_call.1} parent=5 // pred_check_branch
        %569 = sbr.rel (%p567) target = $region44
      $region43: #{tpu_custom_call.1} parent=5 // pred_region
        %s570 = ssub.s32 %s13, 2
        // Predicated region
        $region45: #{tpu_custom_call.1} parent=43 // pred_check
          %p571 = pneg %p82
        $region46: #{tpu_custom_call.1} parent=43 // pred_check_branch
          %573 = sbr.rel (%p571) target = $region48
        $region47: #{tpu_custom_call.1} parent=43 // pred_region
          %s574 = sand.u32 %s67, 1
          %s575 = scalar_lea.sflag [#allocation5], %s574
          %s576 = sand.u32 %s67, 1
          %s577 = smul.addr %s576, 8
          %s578 = scalar_lea.vmem [#allocation6], %s577
          %579 = dma.done %s575, 128
        $region48: #{tpu_custom_call.1} parent=43 // pred_fallthru
          _
      $region44: #{tpu_custom_call.1} parent=5 // pred_fallthru
        _
    $region6: #{tpu_custom_call.1} parent=1 // loop_footer
      %s17 = sadd.s32 1, %s13
    $region7: #{tpu_custom_call.1} parent=1 // loop_footer_branch
      %12 = sbr.rel target = $region3
    $region8: #{tpu_custom_call.1} parent=1 // loop_exit
      _
    %580 = vsyncpa [#allocation4], 1
    %s581 = scalar_lea.sflag [#allocation4], 1
    %582 = vsyncpa %s581, 1
    %583 = vsyncpa [#allocation5], 1
    %s584 = scalar_lea.sflag [#allocation5], 1
    %585 = vsyncpa %s584, 1

</llo_original>
